<compile_context>
chip_gen: v7x
topology: tpu7x:2x2x1
jax: 0.10.0
libtpu: 0.0.40
codegen_flags: <defaults>
</compile_context>

<pallas_src>
import functools

import jax
import jax.numpy as jnp
from jax import lax
from jax.experimental import pallas as pl
from jax.experimental.pallas import tpu as pltpu


def _adain1d_kernel(x_ref, gb_ref, o_ref, *, inv_t):
    # x_ref/o_ref: (c_blk, T)   gb_ref: (c_blk, 2) = [1+gamma, beta]
    x = x_ref[...].astype(jnp.float32)

    # InstanceNorm1d stats over T (biased var; centered for numerical safety).
    mean = jnp.sum(x, axis=-1, keepdims=True) * inv_t
    xc = x - mean
    var = jnp.sum(xc * xc, axis=-1, keepdims=True) * inv_t

    gb = gb_ref[...].astype(jnp.float32)
    g1 = gb[:, 0:1]            # 1 + gamma
    beta = gb[:, 1:2]

    scale = g1 * lax.rsqrt(var + 1e-5)
    # (1 + gamma) * (x - mean) / sqrt(var + eps) + beta
    o_ref[...] = (xc * scale + beta).astype(o_ref.dtype)
    # TODO(synk): on v7x with bf16 I/O, apply in bf16 (cast scale/shift once) to
    # relieve the VALU slots; kept f32 here since v5e has no bf16 VPU.


def _pick_c_blk(B, C, T, itemsize, tile_bytes, min_steps=8):
    """Channel-tile size: a multiple of 8 that divides C (or C itself)."""
    if C % 8 != 0:
        return C  # full-extent channel block sidesteps the sublane-8 alignment rule
    by_bytes = max(8, (tile_bytes // max(1, T * itemsize)) // 8 * 8)   # VMEM budget
    tiles_per_batch = -(-min_steps // max(1, B))                        # ceil
    by_steps = max(8, (C // tiles_per_batch) // 8 * 8)                  # pipelining
    target = max(8, min(C, by_bytes, by_steps))
    best = 8
    for d in range(8, C + 1, 8):
        if C % d == 0 and d <= target:
            best = d
    return best


def adain1d(x, s, w, b, *, tile_bytes=4 * 1024 * 1024):
    """AdaIN1d forward. x: (B, C, T), s: (B, S), w: (2C, S), b: (2C,) -> (B, C, T)."""
    B, C, T = x.shape
    itemsize = jnp.dtype(x.dtype).itemsize

    # Hoisted fc(s): one (B,S)x(S,2C) XLA matmul for the whole batch.
    h = s.astype(jnp.float32) @ w.astype(jnp.float32).T + b.astype(jnp.float32)  # (B, 2C)
    gb = jnp.stack([1.0 + h[:, :C], h[:, C:]], axis=-1)   # (B, C, 2): [1+gamma, beta]

    c_blk = _pick_c_blk(B, C, T, itemsize, tile_bytes)
    # TODO(synk): for extremely long T (8 * T * itemsize >> tile_bytes) split T onto a
    # trailing "arbitrary" grid axis with sum/sumsq accumulators + a second apply sweep.

    # VMEM budget from the actual per-step footprint: double-buffered x/out tiles,
    # f32 working copies (x, xc), the tiny gb tile, plus headroom.
    x_tile = c_blk * T * itemsize
    o_tile = c_blk * T * itemsize
    f32_tmp = 2 * c_blk * T * 4
    vmem_needed = 2 * (x_tile + o_tile + c_blk * 2 * 4) + f32_tmp + (2 << 20)
    vmem_limit = max(16 << 20, int(vmem_needed))
    try:
        vmem_cap = int(pltpu.get_tpu_info().vmem_capacity_bytes)
        vmem_limit = min(vmem_limit, vmem_cap - (8 << 20))
    except Exception:
        vmem_limit = min(vmem_limit, 48 << 20)

    kernel = functools.partial(_adain1d_kernel, inv_t=1.0 / T)

    out = pl.pallas_call(
        kernel,
        out_shape=jax.ShapeDtypeStruct((B, C, T), x.dtype),
        grid_spec=pltpu.PrefetchScalarGridSpec(
            num_scalar_prefetch=0,
            grid=(B, C // c_blk),
            in_specs=[
                pl.BlockSpec((None, c_blk, T), lambda bi, ci: (bi, ci, 0)),  # x tile
                pl.BlockSpec((None, c_blk, 2), lambda bi, ci: (bi, ci, 0)),  # [1+gamma, beta]
            ],
            out_specs=pl.BlockSpec((None, c_blk, T), lambda bi, ci: (bi, ci, 0)),
        ),
        compiler_params=pltpu.CompilerParams(
            dimension_semantics=("parallel", "parallel"),
            vmem_limit_bytes=vmem_limit,
        ),
    )(x, gb)

    return out


def adain1d_ref(x, s, w, b):
    """Pure-JAX reference matching PyTorch AdaIN1d semantics."""
    h = s @ w.T + b                        # (B, 2C)
    C = x.shape[1]
    gamma = h[:, :C, None]
    beta = h[:, C:, None]
    mean = jnp.mean(x, axis=-1, keepdims=True)
    var = jnp.mean((x - mean) ** 2, axis=-1, keepdims=True)
    xn = (x - mean) / jnp.sqrt(var + 1e-5)
    return (1.0 + gamma) * xn + beta


if __name__ == "__main__":
    # Small shapes consistent with AdaIN1d(style_dim, num_features) on (B, C, T) input.
    B, C, T = 2, 8, 16
    style_dim = 32

    key = jax.random.PRNGKey(0)
    kx, ks, kw, kb = jax.random.split(key, 4)

    x = jax.random.normal(kx, (B, C, T), dtype=jnp.float32)
    s = jax.random.normal(ks, (B, style_dim), dtype=jnp.float32)

    # Deterministic synthetic parameters for nn.Linear(style_dim, 2*num_features).
    bound = 1.0 / (style_dim ** 0.5)
    w = jax.random.uniform(kw, (2 * C, style_dim), jnp.float32, -bound, bound)
    b = jax.random.uniform(kb, (2 * C,), jnp.float32, -bound, bound)

    out = adain1d(x, s, w, b)
    out = jax.block_until_ready(out)

    ref = adain1d_ref(x, s, w, b)
    assert out.shape == (B, C, T)
    assert jnp.allclose(out, ref, atol=1e-4, rtol=1e-4), "mismatch vs reference"

    print("KERNEL_OK")
</pallas_src>

<mosaic_0001>
module attributes {stable_mosaic.version = 11 : i64} {
  func.func @_adain1d_kernel(%arg0: i32, %arg1: i32, %arg2: memref<1x8x16xf32, #tpu.memory_space<vmem>>, %arg3: memref<1x8x2xf32, #tpu.memory_space<vmem>>, %arg4: memref<1x8x16xf32, #tpu.memory_space<vmem>>) attributes {dimension_semantics = [#tpu.dimension_semantics<parallel>, #tpu.dimension_semantics<parallel>], iteration_bounds = array<i64: 2, 1>, scalar_prefetch = 0 : i64, scratch_operands = 0 : i64, tpu.core_type = #tpu.core_type<tc>, window_params = [{transform_indices = @transform_0, window_bounds = array<i64: 1, 8, 16>}, {transform_indices = @transform_1, window_bounds = array<i64: 1, 8, 2>}, {transform_indices = @transform_2, window_bounds = array<i64: 1, 8, 16>}]} {
    %c0 = arith.constant 0 : index
    %c0_0 = arith.constant 0 : index
    %c0_1 = arith.constant 0 : index
    %0 = vector.load %arg2[%c0, %c0_0, %c0_1] : memref<1x8x16xf32, #tpu.memory_space<vmem>>, vector<1x8x16xf32>
    %1 = vector.shape_cast %0 : vector<1x8x16xf32> to vector<8x16xf32>
    %cst = arith.constant dense<0.000000e+00> : vector<8xf32>
    %2 = vector.multi_reduction <add>, %1, %cst [1] : vector<8x16xf32> to vector<8xf32>
    %3 = vector.shape_cast %2 : vector<8xf32> to vector<8x1xf32>
    %cst_2 = arith.constant 6.250000e-02 : f32
    %4 = vector.broadcast %cst_2 : f32 to vector<8x1xf32>
    %5 = arith.mulf %3, %4 : vector<8x1xf32>
    %6 = vector.broadcast %5 : vector<8x1xf32> to vector<8x16xf32>
    %7 = arith.subf %1, %6 : vector<8x16xf32>
    %8 = arith.mulf %7, %7 : vector<8x16xf32>
    %cst_3 = arith.constant dense<0.000000e+00> : vector<8xf32>
    %9 = vector.multi_reduction <add>, %8, %cst_3 [1] : vector<8x16xf32> to vector<8xf32>
    %10 = vector.shape_cast %9 : vector<8xf32> to vector<8x1xf32>
    %cst_4 = arith.constant 6.250000e-02 : f32
    %11 = vector.broadcast %cst_4 : f32 to vector<8x1xf32>
    %12 = arith.mulf %10, %11 : vector<8x1xf32>
    %c0_5 = arith.constant 0 : index
    %c0_6 = arith.constant 0 : index
    %c0_7 = arith.constant 0 : index
    %13 = vector.load %arg3[%c0_5, %c0_6, %c0_7] : memref<1x8x2xf32, #tpu.memory_space<vmem>>, vector<1x8x2xf32>
    %14 = vector.shape_cast %13 : vector<1x8x2xf32> to vector<8x2xf32>
    %15 = vector.extract_strided_slice %14 {offsets = [0, 0], sizes = [8, 1], strides = [1, 1]} : vector<8x2xf32> to vector<8x1xf32>
    %16 = vector.extract_strided_slice %14 {offsets = [0, 1], sizes = [8, 1], strides = [1, 1]} : vector<8x2xf32> to vector<8x1xf32>
    %cst_8 = arith.constant 9.99999974E-6 : f32
    %17 = vector.broadcast %cst_8 : f32 to vector<8x1xf32>
    %18 = arith.addf %12, %17 : vector<8x1xf32>
    %19 = math.rsqrt %18 : vector<8x1xf32>
    %20 = arith.mulf %15, %19 : vector<8x1xf32>
    %21 = vector.broadcast %20 : vector<8x1xf32> to vector<8x16xf32>
    %22 = arith.mulf %7, %21 : vector<8x16xf32>
    %23 = vector.broadcast %16 : vector<8x1xf32> to vector<8x16xf32>
    %24 = arith.addf %22, %23 : vector<8x16xf32>
    %c0_9 = arith.constant 0 : index
    %c0_10 = arith.constant 0 : index
    %c0_11 = arith.constant 0 : index
    %25 = vector.load %arg4[%c0_9, %c0_10, %c0_11] : memref<1x8x16xf32, #tpu.memory_space<vmem>>, vector<1x8x16xf32>
    %26 = vector.shape_cast %25 : vector<1x8x16xf32> to vector<8x16xf32>
    %27 = vector.shape_cast %24 : vector<8x16xf32> to vector<1x8x16xf32>
    tpu.vector_store %arg4[%c0_9, %c0_10, %c0_11], %27 {strides = array<i32>} : memref<1x8x16xf32, #tpu.memory_space<vmem>>, vector<1x8x16xf32>,
    return
  }
  func.func @transform_0(%arg0: i32, %arg1: i32) -> (i32, i32, i32) {
    %c0_i32 = arith.constant 0 : i32
    %c0_i32_0 = arith.constant 0 : i32
    return %arg0, %arg1, %c0_i32 : i32, i32, i32
  }
  func.func @transform_1(%arg0: i32, %arg1: i32) -> (i32, i32, i32) {
    %c0_i32 = arith.constant 0 : i32
    %c0_i32_0 = arith.constant 0 : i32
    return %arg0, %arg1, %c0_i32 : i32, i32, i32
  }
  func.func @transform_2(%arg0: i32, %arg1: i32) -> (i32, i32, i32) {
    %c0_i32 = arith.constant 0 : i32
    %c0_i32_0 = arith.constant 0 : i32
    return %arg0, %arg1, %c0_i32 : i32, i32, i32
  }
}

</mosaic_0001>

<llo_original>
// kernel: tpu_custom_call.1
$region0: #{tpu_custom_call.1}
  #allocation0 [shape = 'u32[]', space=smem, size = 0x4, offset = 0x4, fixed_abs, tag = 'smem constant byte address 0x4 - core index']
  #allocation1 [shape = 'u32[144,128]{1,0:T(1,128)}', space=vmem, size = 0x12000, scoped, tag = 'internal scratch']
  %s0 = inlined_call_operand.vmem [shape: f32[2,8,16], index: 0, kind: input, shape index: {}]
  %s1 = inlined_call_operand.vmem [shape: f32[2,8,2], index: 1, kind: input, shape index: {}]
  %s2 = inlined_call_operand.hbm [shape: f32[2,8,16], index: 2, kind: output, shape index: {}]
  %s3 = sld [smem:[#allocation0]]
  $region41: #{tpu_custom_call.1} parent=0
    _
  %s5 = ssub.s32 1, %s3
  %s6 = scalar_select 0, %s5, %s3
  $region1: #{tpu_custom_call.1} parent=0
    #allocation2 [shape = 'u8[8192]{0}', space=vmem, size = 0x2000, scoped, tag = 'output window, operand 0']
    #allocation3 [shape = 's32[2]{0}', space=sflag, size = 0x8, scoped, tag = 'scoped memory for tpu_custom_call.1']
    %7 = vsyncpa [#allocation3], 0
    %s8 = scalar_lea.sflag [#allocation3], 1
    %9 = vsyncpa %s8, 0
    loop: start=0, step=1, limit=4
    $region2: #{tpu_custom_call.1} parent=1 // loop_pre_header
      _
    $region3: #{tpu_custom_call.1} parent=1 // loop_header
      %s11 = sphi 0, %s15
      %p12 = scmp.ge.s32.totalorder %s11, 4
      %s18 = sphi 0, %s30
      %s19 = sphi 0, %s26
      %s20 = sphi 0, %s18
      %s21 = sphi 0, %s19
      %s22 = sphi 0, %s20
      %s23 = sphi 0, %s21
      %s35 = sphi 0, %s37
      %s38 = sphi 0, %s35
      %s39 = sphi 0, %s38
      %s55 = sphi 0, %s39
      %s63 = sphi 0, %s65
      %s66 = sphi 0, %s63
      %s67 = sphi 0, %s66
      %s83 = sphi 0, %s67
      %s91 = sphi 0, %s93
      %s94 = sphi 0, %s91
      %s95 = sphi 0, %s94
      %s111 = sphi 0, %s95
    $region4: #{tpu_custom_call.1} parent=1 // loop_header_branch
      %14 = sbr.rel (%p12) target = $region8
    $region5: #{tpu_custom_call.1} parent=1 // loop_body
      %s16 = ssub.s32 %s11, 1
      %s17 = ssub.s32 %s11, 2
      %s24 = sadd.s32 1, %s19
      %p25 = scmp.ge.s32.totalorder %s24, 1
      %s26 = scalar_select %p25, 0, %s24
      %s27 = sadd.s32 1, %s18
      %s28 = scalar_select %p25, %s27, %s18
      %p29 = scmp.ge.s32.totalorder %s28, 2
      %s30 = scalar_select %p29, 0, %s28
      %s31 = ssub.s32 %s18, %s30
      %s32 = ssub.s32 %s19, %s26
      %s33 = sor.u32 %s31, %s32
      %p34 = scmp.eq.s32.totalorder %s33, 0
      %s36 = sadd.s32 %s35, 1
      %s37 = scalar_select %p34, %s35, %s36
      %p40 = pneg %p34
      %p41 = scmp.eq.s32.totalorder %s11, 1
      %p42 = por %p40, %p41
      %p43 = scmp.ne.s32.totalorder %s35, %s38
      %p44 = scmp.eq.s32.totalorder %s11, 0
      %p45 = por %p43, %p44
      %p46 = scmp.ne.s32.totalorder %s35, %s38
      %p47 = scmp.eq.s32.totalorder %s16, 1
      %p48 = por %p46, %p47
      %p49 = scmp.ne.s32.totalorder %s38, %s39
      %p50 = scmp.eq.s32.totalorder %s16, 0
      %p51 = por %p49, %p50
      %p52 = scmp.ne.s32.totalorder %s38, %s39
      %p53 = scmp.eq.s32.totalorder %s17, 1
      %p54 = por %p52, %p53
      %p56 = scmp.ne.s32.totalorder %s39, %s55
      %p57 = scmp.eq.s32.totalorder %s17, 0
      %p58 = por %p56, %p57
      %s59 = ssub.s32 %s18, %s30
      %s60 = ssub.s32 %s19, %s26
      %s61 = sor.u32 %s59, %s60
      %p62 = scmp.eq.s32.totalorder %s61, 0
      %s64 = sadd.s32 %s63, 1
      %s65 = scalar_select %p62, %s63, %s64
      %p68 = pneg %p62
      %p69 = scmp.eq.s32.totalorder %s11, 1
      %p70 = por %p68, %p69
      %p71 = scmp.ne.s32.totalorder %s63, %s66
      %p72 = scmp.eq.s32.totalorder %s11, 0
      %p73 = por %p71, %p72
      %p74 = scmp.ne.s32.totalorder %s63, %s66
      %p75 = scmp.eq.s32.totalorder %s16, 1
      %p76 = por %p74, %p75
      %p77 = scmp.ne.s32.totalorder %s66, %s67
      %p78 = scmp.eq.s32.totalorder %s16, 0
      %p79 = por %p77, %p78
      %p80 = scmp.ne.s32.totalorder %s66, %s67
      %p81 = scmp.eq.s32.totalorder %s17, 1
      %p82 = por %p80, %p81
      %p84 = scmp.ne.s32.totalorder %s67, %s83
      %p85 = scmp.eq.s32.totalorder %s17, 0
      %p86 = por %p84, %p85
      %s87 = ssub.s32 %s18, %s30
      %s88 = ssub.s32 %s19, %s26
      %s89 = sor.u32 %s87, %s88
      %p90 = scmp.eq.s32.totalorder %s89, 0
      %s92 = sadd.s32 %s91, 1
      %s93 = scalar_select %p90, %s91, %s92
      %p96 = pneg %p90
      %p97 = scmp.eq.s32.totalorder %s11, 1
      %p98 = por %p96, %p97
      %p99 = scmp.ne.s32.totalorder %s91, %s94
      %p100 = scmp.eq.s32.totalorder %s11, 0
      %p101 = por %p99, %p100
      %p102 = scmp.ne.s32.totalorder %s91, %s94
      %p103 = scmp.eq.s32.totalorder %s16, 1
      %p104 = por %p102, %p103
      %p105 = scmp.ne.s32.totalorder %s94, %s95
      %p106 = scmp.eq.s32.totalorder %s16, 0
      %p107 = por %p105, %p106
      %p108 = scmp.ne.s32.totalorder %s94, %s95
      %p109 = scmp.eq.s32.totalorder %s17, 1
      %p110 = por %p108, %p109
      %p112 = scmp.ne.s32.totalorder %s95, %s111
      %p113 = scmp.eq.s32.totalorder %s17, 0
      %p114 = por %p112, %p113
      %p115 = scmp.le.s32.totalorder 1, %s11
      %p116 = scmp.lt.s32.totalorder %s11, 3
      %p117 = pnand %p115, %p116
      %p118 = pneg %p117
      // Predicated region
      $region9: #{tpu_custom_call.1} parent=5 // pred_check
        _
      $region10: #{tpu_custom_call.1} parent=5 // pred_check_branch
        %120 = sbr.rel (%p117) target = $region12
      $region11: #{tpu_custom_call.1} parent=5 // pred_region
        %s121 = ssub.s32 %s11, 1
      $region12: #{tpu_custom_call.1} parent=5 // pred_fallthru
        _
      %p122 = scmp.lt.s32.totalorder %s11, 2
      // Predicated region
      $region13: #{tpu_custom_call.1} parent=5 // pred_check
        %p123 = pneg %p122
      $region14: #{tpu_custom_call.1} parent=5 // pred_check_branch
        %125 = sbr.rel (%p123) target = $region16
      $region15: #{tpu_custom_call.1} parent=5 // pred_region
        // Predicated region
        $region17: #{tpu_custom_call.1} parent=15 // pred_check
          %p126 = pneg %p45
        $region18: #{tpu_custom_call.1} parent=15 // pred_check_branch
          %128 = sbr.rel (%p126) target = $region20
        $region19: #{tpu_custom_call.1} parent=15 // pred_region
          %p129 = scmp.lt.s32.totalorder %s18, 1
          %s130 = scalar_select %p129, %s18, 1
          %p131 = scmp.lt.s32.totalorder %s19, 0
          %s132 = scalar_select %p131, %s19, 0
          %s133 = sadd.s32 %s132, %s130
          %s134 = smul.addr %s133, 8
          %s135 = scalar_lea.vmem %s0, %s134
        $region20: #{tpu_custom_call.1} parent=15 // pred_fallthru
          _
        // Predicated region
        $region21: #{tpu_custom_call.1} parent=15 // pred_check
          %p136 = pneg %p73
        $region22: #{tpu_custom_call.1} parent=15 // pred_check_branch
          %138 = sbr.rel (%p136) target = $region24
        $region23: #{tpu_custom_call.1} parent=15 // pred_region
          %p139 = scmp.lt.s32.totalorder %s18, 1
          %s140 = scalar_select %p139, %s18, 1
          %p141 = scmp.lt.s32.totalorder %s19, 0
          %s142 = scalar_select %p141, %s19, 0
          %s143 = sadd.s32 %s142, %s140
          %s144 = smul.addr %s143, 8
          %s145 = scalar_lea.vmem %s1, %s144
        $region24: #{tpu_custom_call.1} parent=15 // pred_fallthru
          _
      $region16: #{tpu_custom_call.1} parent=5 // pred_fallthru
        _
      %p146 = scmp.le.s32.totalorder 1, %s11
      %p147 = scmp.lt.s32.totalorder %s11, 3
      %p148 = pnand %p146, %p147
      %p149 = pneg %p148
      // Predicated region
      $region25: #{tpu_custom_call.1} parent=5 // pred_check
        _
      $region26: #{tpu_custom_call.1} parent=5 // pred_check_branch
        %151 = sbr.rel (%p148) target = $region28
      $region27: #{tpu_custom_call.1} parent=5 // pred_region
        %s152 = ssub.s32 %s11, 1
        %p153 = scmp.lt.s32.totalorder %s20, 1
        %s154 = scalar_select %p153, %s20, 1
        %p155 = scmp.lt.s32.totalorder %s21, 0
        %s156 = scalar_select %p155, %s21, 0
        %s157 = sadd.s32 %s156, %s154
        %s158 = smul.addr %s157, 8
        %s159 = scalar_lea.vmem %s0, %s158
        %p160 = pneg %p51
        %p161 = pneg %p48
        %p162 = scmp.lt.s32.totalorder %s20, 1
        %s163 = scalar_select %p162, %s20, 1
        %p164 = scmp.lt.s32.totalorder %s21, 0
        %s165 = scalar_select %p164, %s21, 0
        %s166 = sadd.s32 %s165, %s163
        %s167 = smul.addr %s166, 8
        %s168 = scalar_lea.vmem %s1, %s167
        %p169 = pneg %p79
        %p170 = pneg %p76
        %p171 = pneg %p107
        %p172 = pneg %p104
        %s173 = sand.u32 %s94, 1
        %s174 = scalar_lea.sflag [#allocation3], %s173
        %s175 = sand.u32 %s94, 1
        %s176 = smul.addr %s175, 8
        %s177 = scalar_lea.vmem [#allocation2], %s176
        %p178 = scmp.lt.s32.totalorder %s20, 1
        %s179 = scalar_select %p178, %s20, 1
        %p180 = scmp.lt.s32.totalorder %s21, 0
        %s181 = scalar_select %p180, %s21, 0
        %s182 = sadd.s32 %s181, %s179
        %s183 = smul.addr %s182, 8
        %s184 = scalar_lea.vmem %s0, %s183
        %p185 = scmp.lt.s32.totalorder %s20, 1
        %s186 = scalar_select %p185, %s20, 1
        %p187 = scmp.lt.s32.totalorder %s21, 0
        %s188 = scalar_select %p187, %s21, 0
        %s189 = sadd.s32 %s188, %s186
        %s190 = smul.addr %s189, 8
        %s191 = scalar_lea.vmem %s1, %s190
        %v192 = vld [vmem:[%s184] sm:$0xff]
        %vm193 = vcmask 130048
        %v194 = vsel %vm193, %v192, 0.0
        %195 = vadd.xlane.f32.xlu0 %v194
        %v196 = vpop.xlane.xlu0 %195
        %v197 = vmul.f32 %v196, 0.0625
        %v198 = vsub.f32 %v192, %v197
        %v199 = vmul.f32 %v198, %v198
        %v200 = vsel %vm193, %v199, 0.0
        %201 = vadd.xlane.f32.xlu0 %v200
        %v202 = vpop.xlane.xlu0 %201
        %v203 = vmul.f32 %v202, 0.0625
        %v204 = vld [vmem:[%s191] sm:$0xff]
        %v205 = vadd.f32 %v203, 1e-05
        %v206 = vrsqrt.pop %v205
        %v207 = vmul.f32 %v204, %v206
        %209 = vset.pattern.permute.xlu0 0
        %210 = vperm.xlu0 %209, %v207
        %v211 = vpop.permute.xlu0 %210
        %v213 = vmul.f32 %v198, %v211
        %215 = vset.pattern.permute.xlu0 1
        %216 = vperm.xlu0 %215, %v204
        %v217 = vpop.permute.xlu0 %216
        %v219 = vadd.f32 %v213, %v217
        %220 = vst.msk [vmem:[%s177] sm:$0xff] %vm193, %v219
        %s221 = sand.u32 %s94, 1
        %s222 = scalar_lea.sflag [#allocation3], %s221
        %s223 = sand.u32 %s94, 1
        %s224 = smul.addr %s223, 8
        %s225 = scalar_lea.vmem [#allocation2], %s224
        // Predicated region
        $region29: #{tpu_custom_call.1} parent=27 // pred_check
          %p226 = pneg %p104
        $region30: #{tpu_custom_call.1} parent=27 // pred_check_branch
          %228 = sbr.rel (%p226) target = $region32
        $region31: #{tpu_custom_call.1} parent=27 // pred_region
          %s230 = ssub.s32 128, 128
          %231 = vsyncadd %s222, %s230
          %s232 = sadd.s32 %s21, %s20
          %s233 = smul.addr %s232, 128
          %s234 = scalar_lea.hbm %s2, %s233
          %s236 = sshll.u32 %s225, 4
          %s237 = int_to_ptr.vmem [resolvable:$true] %s236
          %239 = dma.vmem_to_hbm [thread:$0]  %s237, 128, %s234, %s222
        $region32: #{tpu_custom_call.1} parent=27 // pred_fallthru
          _
      $region28: #{tpu_custom_call.1} parent=5 // pred_fallthru
        _
      %p240 = scmp.le.s32.totalorder 2, %s11
      // Predicated region
      $region33: #{tpu_custom_call.1} parent=5 // pred_check
        %p241 = pneg %p240
      $region34: #{tpu_custom_call.1} parent=5 // pred_check_branch
        %243 = sbr.rel (%p241) target = $region36
      $region35: #{tpu_custom_call.1} parent=5 // pred_region
        %s244 = ssub.s32 %s11, 2
        // Predicated region
        $region37: #{tpu_custom_call.1} parent=35 // pred_check
          %p245 = pneg %p110
        $region38: #{tpu_custom_call.1} parent=35 // pred_check_branch
          %247 = sbr.rel (%p245) target = $region40
        $region39: #{tpu_custom_call.1} parent=35 // pred_region
          %s248 = sand.u32 %s95, 1
          %s249 = scalar_lea.sflag [#allocation3], %s248
          %s250 = sand.u32 %s95, 1
          %s251 = smul.addr %s250, 8
          %s252 = scalar_lea.vmem [#allocation2], %s251
          %253 = dma.done %s249, 128
        $region40: #{tpu_custom_call.1} parent=35 // pred_fallthru
          _
      $region36: #{tpu_custom_call.1} parent=5 // pred_fallthru
        _
    $region6: #{tpu_custom_call.1} parent=1 // loop_footer
      %s15 = sadd.s32 1, %s11
    $region7: #{tpu_custom_call.1} parent=1 // loop_footer_branch
      %10 = sbr.rel target = $region3
    $region8: #{tpu_custom_call.1} parent=1 // loop_exit
      _
    %254 = vsyncpa [#allocation3], 1
    %s255 = scalar_lea.sflag [#allocation3], 1
    %256 = vsyncpa %s255, 1

</llo_original>
